<compile_context>
chip_gen: v7x
topology: tpu7x:2x2x1
jax: 0.10.0
libtpu: 0.0.40
codegen_flags: <defaults>
</compile_context>

<pallas_src>
import functools

import jax
import jax.numpy as jnp
from jax.experimental import pallas as pl
from jax.experimental.pallas import tpu as pltpu


def _round_up(n: int, m: int) -> int:
    return ((n + m - 1) // m) * m


# ---------------------------------------------------------------------------
# Kernel: qp = relu(xp @ W1e + b1e) @ WQe + bQe on lane-dense packed rows.
# ---------------------------------------------------------------------------
def _vanet_kernel(xp_ref, w1e_ref, b1e_ref, wqe_ref, bqe_ref, qp_ref):
    # x arrives in native f32 (single HBM pass); cast to bf16 only for the MXU.
    x = xp_ref[...].astype(jnp.bfloat16)
    h = jnp.dot(x, w1e_ref[...], preferred_element_type=jnp.float32)
    h = jnp.maximum(h + b1e_ref[...], 0.0)                    # f32 bias + ReLU
    q = jnp.dot(h.astype(jnp.bfloat16), wqe_ref[...],
                preferred_element_type=jnp.float32)
    qp_ref[...] = (q + bqe_ref[...]).astype(qp_ref.dtype)


def _fold_dueling_head(wa, ba, wv, bv):
    """Q = V + A - mean(A) is linear in h -> fold into one (hidden, action) layer."""
    wq = wv + wa - jnp.mean(wa, axis=1, keepdims=True)
    bq = bv + ba - jnp.mean(ba, axis=1, keepdims=True)
    return wq, bq


def _block_diag(w, p):
    """(i, o) -> (p*i, p*o) block-diagonal with `w` repeated on the diagonal."""
    i, o = w.shape
    eye = jnp.eye(p, dtype=w.dtype)
    return (eye[:, None, :, None] * w[None, :, None, :]).reshape(p * i, p * o)


def _vanet_jnp(x, w1, b1, wq, bq):
    h = jnp.maximum(x @ w1 + b1, 0.0)
    return h @ wq + bq


def _vanet_pallas(x, w1, b1, wq, bq, *, pack, block_b):
    B, obs_dim = x.shape
    hidden_dim = w1.shape[1]
    action_dim = wq.shape[1]
    assert B % pack == 0
    bp = B // pack
    in_w, hid_w, out_w = pack * obs_dim, pack * hidden_dim, pack * action_dim

    # Free contiguous reshape: `pack` samples -> one lane-dense row (no HBM pass).
    xp = x.reshape(bp, in_w)

    # Tiny block-diagonal weight expansion; bf16 MXU operands, f32 biases.
    w1e = _block_diag(w1, pack).astype(jnp.bfloat16)           # (in_w, hid_w)
    b1e = jnp.tile(b1, (1, pack))                              # (1, hid_w)
    wqe = _block_diag(wq, pack).astype(jnp.bfloat16)           # (hid_w, out_w)
    bqe = jnp.tile(bq, (1, pack))                              # (1, out_w)

    # Packed-row tile: VMEM-limited cap (~0.8 KB/sample), always >= 2 grid steps
    # so v7x can shard the batch across both TensorCores; rounded to 16 rows.
    tbp_cap = max(16, _round_up(block_b // pack, 16))
    tbp = min(tbp_cap, max(16, _round_up(pl.cdiv(bp, 2), 16)))
    grid = (pl.cdiv(bp, tbp),)

    qp = pl.pallas_call(
        _vanet_kernel,
        out_shape=jax.ShapeDtypeStruct((bp, out_w), jnp.float32),
        grid=grid,
        in_specs=[
            # Batch-tiled, lane-dense activation stream (software pipelined).
            pl.BlockSpec((tbp, in_w), lambda i: (i, 0)),
            # Weights / biases: constant index_map -> DMA'd once, VMEM-resident.
            pl.BlockSpec((in_w, hid_w), lambda i: (0, 0)),
            pl.BlockSpec((1, hid_w), lambda i: (0, 0)),
            pl.BlockSpec((hid_w, out_w), lambda i: (0, 0)),
            pl.BlockSpec((1, out_w), lambda i: (0, 0)),
        ],
        out_specs=pl.BlockSpec((tbp, out_w), lambda i: (i, 0)),
        compiler_params=pltpu.CompilerParams(
            dimension_semantics=("parallel",),        # megacore batch sharding
            vmem_limit_bytes=48 * 1024 * 1024),       # > default scope, < v7x phys
    )(xp, w1e, b1e, wqe, bqe)

    # Free reshape back to (B, action_dim).
    return qp.reshape(B, action_dim)


@functools.partial(jax.jit, static_argnames=("block_b", "min_pallas_batch"))
def vanet_forward(x, w1, b1, wa, ba, wv, bv, *, block_b=16384,
                  min_pallas_batch=256):
    """Dueling-Q forward.  x: (B, obs_dim) or (obs_dim,); weights (in, out), f32.

    NOTE: like the reference PyTorch module, a 1-D input returns shape
    (1, action_dim) (the torch `squeeze` branch is dead code because x is
    re-assigned by unsqueeze before the check)."""
    if x.ndim == 1:
        x = x[None, :]
    x = x.astype(jnp.float32)
    B, obs_dim = x.shape
    hidden_dim = w1.shape[1]

    wq, bq = _fold_dueling_head(wa, ba, wv, bv)

    # Tiny batches: Pallas launch + weight DMA latency dominates; let XLA do it.
    if B < min_pallas_batch:
        return _vanet_jnp(x, w1, b1, wq, bq)

    # Row-packing factor so the x stream fills the 128 lanes.
    pack = max(1, 128 // obs_dim) if obs_dim <= 128 else 1
    pack = min(pack, max(1, 4096 // max(1, hidden_dim)))

    b_main = (B // pack) * pack
    q_main = _vanet_pallas(x[:b_main], w1, b1, wq, bq, pack=pack, block_b=block_b)
    if b_main == B:
        return q_main
    # Ragged tail (< pack rows): negligible, plain XLA.
    q_tail = _vanet_jnp(x[b_main:], w1, b1, wq, bq)
    return jnp.concatenate([q_main, q_tail], axis=0)


# ---------------------------------------------------------------------------
# Init + pure-f32 reference (original unfused VANet math) for validation.
# ---------------------------------------------------------------------------
def init_vanet_params(key, obs_dim, action_dim, hidden_dim):
    """torch.nn.Linear-style init; weights pre-transposed to (in, out), f32."""
    ks = jax.random.split(key, 6)

    def lin(kw, kb, fan_in, fan_out):
        bound = 1.0 / float(fan_in) ** 0.5
        w = jax.random.uniform(kw, (fan_in, fan_out), jnp.float32, -bound, bound)
        b = jax.random.uniform(kb, (1, fan_out), jnp.float32, -bound, bound)
        return w, b

    w1, b1 = lin(ks[0], ks[1], obs_dim, hidden_dim)
    wa, ba = lin(ks[2], ks[3], hidden_dim, action_dim)
    wv, bv = lin(ks[4], ks[5], hidden_dim, 1)
    return w1, b1, wa, ba, wv, bv


def vanet_reference(x, w1, b1, wa, ba, wv, bv):
    if x.ndim == 1:
        x = x[None, :]
    h = jnp.maximum(x @ w1 + b1, 0.0)
    a = h @ wa + ba
    v = h @ wv + bv
    return v + a - jnp.mean(a, axis=1, keepdims=True)


if __name__ == "__main__":
    obs_dim, action_dim, hidden_dim = 16, 4, 64
    key = jax.random.PRNGKey(0)
    kx, kp = jax.random.split(key)
    params = init_vanet_params(kp, obs_dim, action_dim, hidden_dim)

    # Main check: batch large enough for the Pallas path (pack=8, 2 grid steps).
    batch = 1024
    x = jax.random.normal(kx, (batch, obs_dim), jnp.float32)
    q = jax.block_until_ready(vanet_forward(x, *params))
    q_ref = vanet_reference(x, *params)
    assert q.shape == (batch, action_dim)
    assert jnp.allclose(q, q_ref, atol=5e-2, rtol=5e-2), "mismatch vs reference"

    # Ragged batch: exercises the partial last grid block + tiny jnp tail.
    q_r = jax.block_until_ready(vanet_forward(x[:1003], *params))
    assert q_r.shape == (1003, action_dim)
    assert jnp.allclose(q_r, q_ref[:1003], atol=5e-2, rtol=5e-2), "mismatch ragged"

    # 1-D input mirrors the PyTorch module exactly (returns (1, action_dim)).
    q_1d = jax.block_until_ready(vanet_forward(x[0], *params))
    assert q_1d.shape == (1, action_dim)

    print("KERNEL_OK")
</pallas_src>

<mosaic_0001>
module attributes {stable_mosaic.version = 11 : i64} {
  func.func @_vanet_kernel(%arg0: i32, %arg1: memref<64x128xf32, #tpu.memory_space<vmem>>, %arg2: memref<128x512xbf16, #tpu.memory_space<vmem>>, %arg3: memref<1x512xf32, #tpu.memory_space<vmem>>, %arg4: memref<512x32xbf16, #tpu.memory_space<vmem>>, %arg5: memref<1x32xf32, #tpu.memory_space<vmem>>, %arg6: memref<64x32xf32, #tpu.memory_space<vmem>>) attributes {dimension_semantics = [#tpu.dimension_semantics<parallel>], iteration_bounds = array<i64: 2>, scalar_prefetch = 0 : i64, scratch_operands = 0 : i64, tpu.core_type = #tpu.core_type<tc>, window_params = [{transform_indices = @transform_0, window_bounds = array<i64: 64, 128>}, {pipeline_mode = #tpu.pipeline_mode<synchronous>, transform_indices = @transform_1, window_bounds = array<i64: 128, 512>}, {pipeline_mode = #tpu.pipeline_mode<synchronous>, transform_indices = @transform_2, window_bounds = array<i64: 1, 512>}, {pipeline_mode = #tpu.pipeline_mode<synchronous>, transform_indices = @transform_3, window_bounds = array<i64: 512, 32>}, {pipeline_mode = #tpu.pipeline_mode<synchronous>, transform_indices = @transform_4, window_bounds = array<i64: 1, 32>}, {transform_indices = @transform_5, window_bounds = array<i64: 64, 32>}]} {
    %c0 = arith.constant 0 : index
    %c0_0 = arith.constant 0 : index
    %0 = vector.load %arg1[%c0, %c0_0] : memref<64x128xf32, #tpu.memory_space<vmem>>, vector<64x128xf32>
    %1 = arith.truncf %0 : vector<64x128xf32> to vector<64x128xbf16>
    %c0_1 = arith.constant 0 : index
    %c0_2 = arith.constant 0 : index
    %2 = vector.load %arg2[%c0_1, %c0_2] : memref<128x512xbf16, #tpu.memory_space<vmem>>, vector<128x512xbf16>
    %cst = arith.constant dense<0.000000e+00> : vector<64x512xf32>
    %3 = tpu.matmul %1, %2, %cst {dimension_numbers = #tpu.dot_dimension_numbers<[1], [0], [0], [1], [0, 0, 1, 1], [], []>} : vector<64x128xbf16>, vector<128x512xbf16>, vector<64x512xf32> -> vector<64x512xf32>
    %c0_3 = arith.constant 0 : index
    %c0_4 = arith.constant 0 : index
    %4 = vector.load %arg3[%c0_3, %c0_4] : memref<1x512xf32, #tpu.memory_space<vmem>>, vector<1x512xf32>
    %5 = vector.broadcast %4 : vector<1x512xf32> to vector<64x512xf32>
    %6 = arith.addf %3, %5 : vector<64x512xf32>
    %cst_5 = arith.constant 0.000000e+00 : f32
    %7 = vector.broadcast %cst_5 : f32 to vector<64x512xf32>
    %8 = arith.maximumf %6, %7 : vector<64x512xf32>
    %9 = arith.truncf %8 : vector<64x512xf32> to vector<64x512xbf16>
    %c0_6 = arith.constant 0 : index
    %c0_7 = arith.constant 0 : index
    %10 = vector.load %arg4[%c0_6, %c0_7] : memref<512x32xbf16, #tpu.memory_space<vmem>>, vector<512x32xbf16>
    %cst_8 = arith.constant dense<0.000000e+00> : vector<64x32xf32>
    %11 = tpu.matmul %9, %10, %cst_8 {dimension_numbers = #tpu.dot_dimension_numbers<[1], [0], [0], [1], [0, 0, 1, 1], [], []>} : vector<64x512xbf16>, vector<512x32xbf16>, vector<64x32xf32> -> vector<64x32xf32>
    %c0_9 = arith.constant 0 : index
    %c0_10 = arith.constant 0 : index
    %12 = vector.load %arg5[%c0_9, %c0_10] : memref<1x32xf32, #tpu.memory_space<vmem>>, vector<1x32xf32>
    %13 = vector.broadcast %12 : vector<1x32xf32> to vector<64x32xf32>
    %14 = arith.addf %11, %13 : vector<64x32xf32>
    %c0_11 = arith.constant 0 : index
    %c0_12 = arith.constant 0 : index
    %15 = vector.load %arg6[%c0_11, %c0_12] : memref<64x32xf32, #tpu.memory_space<vmem>>, vector<64x32xf32>
    tpu.vector_store %arg6[%c0_11, %c0_12], %14 {strides = array<i32>} : memref<64x32xf32, #tpu.memory_space<vmem>>, vector<64x32xf32>,
    return
  }
  func.func @transform_0(%arg0: i32) -> (i32, i32) {
    %c0_i32 = arith.constant 0 : i32
    %c0_i32_0 = arith.constant 0 : i32
    return %arg0, %c0_i32 : i32, i32
  }
  func.func @transform_1(%arg0: i32) -> (i32, i32) {
    %c0_i32 = arith.constant 0 : i32
    %c0_i32_0 = arith.constant 0 : i32
    %c0_i32_1 = arith.constant 0 : i32
    return %c0_i32, %c0_i32_0 : i32, i32
  }
  func.func @transform_2(%arg0: i32) -> (i32, i32) {
    %c0_i32 = arith.constant 0 : i32
    %c0_i32_0 = arith.constant 0 : i32
    %c0_i32_1 = arith.constant 0 : i32
    return %c0_i32, %c0_i32_0 : i32, i32
  }
  func.func @transform_3(%arg0: i32) -> (i32, i32) {
    %c0_i32 = arith.constant 0 : i32
    %c0_i32_0 = arith.constant 0 : i32
    %c0_i32_1 = arith.constant 0 : i32
    return %c0_i32, %c0_i32_0 : i32, i32
  }
  func.func @transform_4(%arg0: i32) -> (i32, i32) {
    %c0_i32 = arith.constant 0 : i32
    %c0_i32_0 = arith.constant 0 : i32
    %c0_i32_1 = arith.constant 0 : i32
    return %c0_i32, %c0_i32_0 : i32, i32
  }
  func.func @transform_5(%arg0: i32) -> (i32, i32) {
    %c0_i32 = arith.constant 0 : i32
    %c0_i32_0 = arith.constant 0 : i32
    return %arg0, %c0_i32 : i32, i32
  }
}

</mosaic_0001>

<llo_original>
// kernel: vanet_forward.1
$region0: #{vanet_forward.1}
  #allocation0 [shape = 'u32[]', space=smem, size = 0x4, offset = 0x4, fixed_abs, tag = 'smem constant byte address 0x4 - core index']
  #allocation1 [shape = 'u32[144,128]{1,0:T(1,128)}', space=vmem, size = 0x12000, scoped, tag = 'internal scratch']
  %s0 = inlined_call_operand.vmem [shape: f32[128,128], index: 0, kind: input, shape index: {}]
  %s1 = inlined_call_operand.vmem [shape: bf16[128,512], index: 1, kind: input, shape index: {}]
  %s2 = inlined_call_operand.vmem [shape: f32[1,512], index: 2, kind: input, shape index: {}]
  %s3 = inlined_call_operand.vmem [shape: bf16[512,32], index: 3, kind: input, shape index: {}]
  %s4 = inlined_call_operand.vmem [shape: f32[1,32], index: 4, kind: input, shape index: {}]
  %s5 = inlined_call_operand.vmem [shape: f32[128,32], index: 5, kind: output, shape index: {}]
  %s6 = sld [smem:[#allocation0]]
  $region53: #{vanet_forward.1} parent=0
    _
  %s8 = ssub.s32 1, %s6
  %s9 = scalar_select 0, %s8, %s6
  loop: start=0, step=1, limit=4
  $region2: #{vanet_forward.1} parent=0 // loop_pre_header
    _
  $region3: #{vanet_forward.1} parent=0 // loop_header
    %s11 = sphi 0, %s15
    %p12 = scmp.ge.s32.totalorder %s11, 4
    %s21 = sphi 0, %s23
    %s24 = sphi 0, %s21
    %s25 = sphi 0, %s24
    %s41 = sphi 0, %s25
    %s45 = sphi 0, %s45
    %s47 = sphi 0, %s45
    %s48 = sphi 0, %s47
    %s62 = sphi 0, %s48
    %s66 = sphi 0, %s66
    %s68 = sphi 0, %s66
    %s69 = sphi 0, %s68
    %s83 = sphi 0, %s69
    %s87 = sphi 0, %s87
    %s89 = sphi 0, %s87
    %s90 = sphi 0, %s89
    %s104 = sphi 0, %s90
    %s108 = sphi 0, %s108
    %s110 = sphi 0, %s108
    %s111 = sphi 0, %s110
    %s125 = sphi 0, %s111
    %s131 = sphi 0, %s133
    %s134 = sphi 0, %s131
    %s135 = sphi 0, %s134
    %s151 = sphi 0, %s135
  $region4: #{vanet_forward.1} parent=0 // loop_header_branch
    %14 = sbr.rel (%p12) target = $region8
  $region5: #{vanet_forward.1} parent=0 // loop_body
    %s16 = ssub.s32 %s11, 1
    %s17 = ssub.s32 %s11, 2
    %s18 = sadd.s32 %s11, 1
    %s19 = ssub.s32 %s11, %s18
    %p20 = scmp.eq.s32.totalorder %s19, 0
    %s22 = sadd.s32 %s21, 1
    %s23 = scalar_select %p20, %s21, %s22
    %p26 = pneg %p20
    %p27 = scmp.eq.s32.totalorder %s11, 1
    %p28 = por %p26, %p27
    %p29 = scmp.ne.s32.totalorder %s21, %s24
    %p30 = scmp.eq.s32.totalorder %s11, 0
    %p31 = por %p29, %p30
    %p32 = scmp.ne.s32.totalorder %s21, %s24
    %p33 = scmp.eq.s32.totalorder %s16, 1
    %p34 = por %p32, %p33
    %p35 = scmp.ne.s32.totalorder %s24, %s25
    %p36 = scmp.eq.s32.totalorder %s16, 0
    %p37 = por %p35, %p36
    %p38 = scmp.ne.s32.totalorder %s24, %s25
    %p39 = scmp.eq.s32.totalorder %s17, 1
    %p40 = por %p38, %p39
    %p42 = scmp.ne.s32.totalorder %s25, %s41
    %p43 = scmp.eq.s32.totalorder %s17, 0
    %p44 = por %p42, %p43
    %s46 = sadd.s32 %s45, 1
    %p49 = scmp.eq.s32.totalorder %s11, 1
    %p50 = scmp.ne.s32.totalorder %s45, %s47
    %p51 = scmp.eq.s32.totalorder %s11, 0
    %p52 = por %p50, %p51
    %p53 = scmp.ne.s32.totalorder %s45, %s47
    %p54 = scmp.eq.s32.totalorder %s16, 1
    %p55 = por %p53, %p54
    %p56 = scmp.ne.s32.totalorder %s47, %s48
    %p57 = scmp.eq.s32.totalorder %s16, 0
    %p58 = por %p56, %p57
    %p59 = scmp.ne.s32.totalorder %s47, %s48
    %p60 = scmp.eq.s32.totalorder %s17, 1
    %p61 = por %p59, %p60
    %p63 = scmp.ne.s32.totalorder %s48, %s62
    %p64 = scmp.eq.s32.totalorder %s17, 0
    %p65 = por %p63, %p64
    %s67 = sadd.s32 %s66, 1
    %p70 = scmp.eq.s32.totalorder %s11, 1
    %p71 = scmp.ne.s32.totalorder %s66, %s68
    %p72 = scmp.eq.s32.totalorder %s11, 0
    %p73 = por %p71, %p72
    %p74 = scmp.ne.s32.totalorder %s66, %s68
    %p75 = scmp.eq.s32.totalorder %s16, 1
    %p76 = por %p74, %p75
    %p77 = scmp.ne.s32.totalorder %s68, %s69
    %p78 = scmp.eq.s32.totalorder %s16, 0
    %p79 = por %p77, %p78
    %p80 = scmp.ne.s32.totalorder %s68, %s69
    %p81 = scmp.eq.s32.totalorder %s17, 1
    %p82 = por %p80, %p81
    %p84 = scmp.ne.s32.totalorder %s69, %s83
    %p85 = scmp.eq.s32.totalorder %s17, 0
    %p86 = por %p84, %p85
    %s88 = sadd.s32 %s87, 1
    %p91 = scmp.eq.s32.totalorder %s11, 1
    %p92 = scmp.ne.s32.totalorder %s87, %s89
    %p93 = scmp.eq.s32.totalorder %s11, 0
    %p94 = por %p92, %p93
    %p95 = scmp.ne.s32.totalorder %s87, %s89
    %p96 = scmp.eq.s32.totalorder %s16, 1
    %p97 = por %p95, %p96
    %p98 = scmp.ne.s32.totalorder %s89, %s90
    %p99 = scmp.eq.s32.totalorder %s16, 0
    %p100 = por %p98, %p99
    %p101 = scmp.ne.s32.totalorder %s89, %s90
    %p102 = scmp.eq.s32.totalorder %s17, 1
    %p103 = por %p101, %p102
    %p105 = scmp.ne.s32.totalorder %s90, %s104
    %p106 = scmp.eq.s32.totalorder %s17, 0
    %p107 = por %p105, %p106
    %s109 = sadd.s32 %s108, 1
    %p112 = scmp.eq.s32.totalorder %s11, 1
    %p113 = scmp.ne.s32.totalorder %s108, %s110
    %p114 = scmp.eq.s32.totalorder %s11, 0
    %p115 = por %p113, %p114
    %p116 = scmp.ne.s32.totalorder %s108, %s110
    %p117 = scmp.eq.s32.totalorder %s16, 1
    %p118 = por %p116, %p117
    %p119 = scmp.ne.s32.totalorder %s110, %s111
    %p120 = scmp.eq.s32.totalorder %s16, 0
    %p121 = por %p119, %p120
    %p122 = scmp.ne.s32.totalorder %s110, %s111
    %p123 = scmp.eq.s32.totalorder %s17, 1
    %p124 = por %p122, %p123
    %p126 = scmp.ne.s32.totalorder %s111, %s125
    %p127 = scmp.eq.s32.totalorder %s17, 0
    %p128 = por %p126, %p127
    %s129 = ssub.s32 %s11, %s18
    %p130 = scmp.eq.s32.totalorder %s129, 0
    %s132 = sadd.s32 %s131, 1
    %s133 = scalar_select %p130, %s131, %s132
    %p136 = pneg %p130
    %p137 = scmp.eq.s32.totalorder %s11, 1
    %p138 = por %p136, %p137
    %p139 = scmp.ne.s32.totalorder %s131, %s134
    %p140 = scmp.eq.s32.totalorder %s11, 0
    %p141 = por %p139, %p140
    %p142 = scmp.ne.s32.totalorder %s131, %s134
    %p143 = scmp.eq.s32.totalorder %s16, 1
    %p144 = por %p142, %p143
    %p145 = scmp.ne.s32.totalorder %s134, %s135
    %p146 = scmp.eq.s32.totalorder %s16, 0
    %p147 = por %p145, %p146
    %p148 = scmp.ne.s32.totalorder %s134, %s135
    %p149 = scmp.eq.s32.totalorder %s17, 1
    %p150 = por %p148, %p149
    %p152 = scmp.ne.s32.totalorder %s135, %s151
    %p153 = scmp.eq.s32.totalorder %s17, 0
    %p154 = por %p152, %p153
    %p155 = scmp.le.s32.totalorder 1, %s11
    %p156 = scmp.lt.s32.totalorder %s11, 3
    %p157 = pnand %p155, %p156
    %p158 = pneg %p157
    // Predicated region
    $region9: #{vanet_forward.1} parent=5 // pred_check
      _
    $region10: #{vanet_forward.1} parent=5 // pred_check_branch
      %160 = sbr.rel (%p157) target = $region12
    $region11: #{vanet_forward.1} parent=5 // pred_region
      %s161 = ssub.s32 %s11, 1
      // Predicated region
      $region13: #{vanet_forward.1} parent=11 // pred_check
        %p162 = pneg %p58
      $region14: #{vanet_forward.1} parent=11 // pred_check_branch
        %164 = sbr.rel (%p162) target = $region16
      $region15: #{vanet_forward.1} parent=11 // pred_region
        _
      $region16: #{vanet_forward.1} parent=11 // pred_fallthru
        _
      // Predicated region
      $region17: #{vanet_forward.1} parent=11 // pred_check
        %p165 = pneg %p79
      $region18: #{vanet_forward.1} parent=11 // pred_check_branch
        %167 = sbr.rel (%p165) target = $region20
      $region19: #{vanet_forward.1} parent=11 // pred_region
        _
      $region20: #{vanet_forward.1} parent=11 // pred_fallthru
        _
      // Predicated region
      $region21: #{vanet_forward.1} parent=11 // pred_check
        %p168 = pneg %p100
      $region22: #{vanet_forward.1} parent=11 // pred_check_branch
        %170 = sbr.rel (%p168) target = $region24
      $region23: #{vanet_forward.1} parent=11 // pred_region
        _
      $region24: #{vanet_forward.1} parent=11 // pred_fallthru
        _
      // Predicated region
      $region25: #{vanet_forward.1} parent=11 // pred_check
        %p171 = pneg %p121
      $region26: #{vanet_forward.1} parent=11 // pred_check_branch
        %173 = sbr.rel (%p171) target = $region28
      $region27: #{vanet_forward.1} parent=11 // pred_region
        _
      $region28: #{vanet_forward.1} parent=11 // pred_fallthru
        _
    $region12: #{vanet_forward.1} parent=5 // pred_fallthru
      _
    %p174 = scmp.lt.s32.totalorder %s11, 2
    // Predicated region
    $region29: #{vanet_forward.1} parent=5 // pred_check
      %p175 = pneg %p174
    $region30: #{vanet_forward.1} parent=5 // pred_check_branch
      %177 = sbr.rel (%p175) target = $region32
    $region31: #{vanet_forward.1} parent=5 // pred_region
      // Predicated region
      $region33: #{vanet_forward.1} parent=31 // pred_check
        %p178 = pneg %p31
      $region34: #{vanet_forward.1} parent=31 // pred_check_branch
        %180 = sbr.rel (%p178) target = $region36
      $region35: #{vanet_forward.1} parent=31 // pred_region
        %s181 = smul.u32 8, %s11
        %p182 = scmp.lt.s32.totalorder %s181, 15
        %s183 = scalar_select %p182, %s181, 15
        %s184 = smul.addr %s183, 8
        %s185 = scalar_lea.vmem %s0, %s184
        %s186 = smul.u32 8, %s11
      $region36: #{vanet_forward.1} parent=31 // pred_fallthru
        _
    $region32: #{vanet_forward.1} parent=5 // pred_fallthru
      _
    %p187 = scmp.le.s32.totalorder 1, %s11
    %p188 = scmp.lt.s32.totalorder %s11, 3
    %p189 = pnand %p187, %p188
    %p190 = pneg %p189
    // Predicated region
    $region37: #{vanet_forward.1} parent=5 // pred_check
      _
    $region38: #{vanet_forward.1} parent=5 // pred_check_branch
      %192 = sbr.rel (%p189) target = $region40
    $region39: #{vanet_forward.1} parent=5 // pred_region
      %s193 = ssub.s32 %s11, 1
      %s194 = smul.u32 8, %s16
      %p195 = scmp.lt.s32.totalorder %s194, 15
      %s196 = scalar_select %p195, %s194, 15
      %s197 = smul.addr %s196, 8
      %s198 = scalar_lea.vmem %s0, %s197
      %p199 = pneg %p37
      %p200 = pneg %p34
      %p201 = pneg %p58
      %p202 = pneg %p55
      %p203 = pneg %p79
      %p204 = pneg %p76
      %p205 = pneg %p100
      %p206 = pneg %p97
      %p207 = pneg %p121
      %p208 = pneg %p118
      %p209 = pneg %p147
      %p210 = pneg %p144
      %s211 = smul.u32 8, %s16
      %p212 = scmp.lt.s32.totalorder %s211, 15
      %s213 = scalar_select %p212, %s211, 15
      %s214 = smul.addr %s213, 8
      %s215 = scalar_lea.vmem %s5, %s214
      %s216 = smul.u32 8, %s16
      %p217 = scmp.lt.s32.totalorder %s216, 15
      %s218 = scalar_select %p217, %s216, 15
      %s219 = smul.addr %s218, 8
      %s220 = scalar_lea.vmem %s0, %s219
      %s221 = smul.u32 8, %s16
      %s222 = smul.u32 8, %s16
      %p223 = scmp.lt.s32.totalorder %s222, 15
      %s224 = scalar_select %p223, %s222, 15
      %s225 = smul.addr %s224, 8
      %s226 = scalar_lea.vmem %s5, %s225
      %s227 = smul.u32 8, %s16
      %v229 = vld [vmem:[%s220] sm:$0xff]
      %v230 = vld [vmem:[%s220 + $0x8] sm:$0xff]
      %v231 = vld [vmem:[%s220 + $0x10] sm:$0xff]
      %v232 = vld [vmem:[%s220 + $0x18] sm:$0xff]
      %v233 = vld [vmem:[%s220 + $0x20] sm:$0xff]
      %v234 = vld [vmem:[%s220 + $0x28] sm:$0xff]
      %v235 = vld [vmem:[%s220 + $0x30] sm:$0xff]
      %v236 = vld [vmem:[%s220 + $0x38] sm:$0xff]
      %v237 = vpack.c.bf16 %v230, %v229
      %v238 = vpack.c.bf16 %v232, %v231
      %v239 = vpack.c.bf16 %v234, %v233
      %v240 = vpack.c.bf16 %v236, %v235
      %v241 = vld [vmem:[%s1] sm:$0xff]
      %v242 = vld [vmem:[%s1 + $0x8] sm:$0xff]
      %v243 = vld [vmem:[%s1 + $0x10] sm:$0xff]
      %v244 = vld [vmem:[%s1 + $0x18] sm:$0xff]
      %v245 = vld [vmem:[%s1 + $0x20] sm:$0xff]
      %v246 = vld [vmem:[%s1 + $0x28] sm:$0xff]
      %v247 = vld [vmem:[%s1 + $0x30] sm:$0xff]
      %v248 = vld [vmem:[%s1 + $0x38] sm:$0xff]
      %v249 = vld [vmem:[%s1 + $0x40] sm:$0xff]
      %v250 = vld [vmem:[%s1 + $0x48] sm:$0xff]
      %v251 = vld [vmem:[%s1 + $0x50] sm:$0xff]
      %v252 = vld [vmem:[%s1 + $0x58] sm:$0xff]
      %v253 = vld [vmem:[%s1 + $0x60] sm:$0xff]
      %v254 = vld [vmem:[%s1 + $0x68] sm:$0xff]
      %v255 = vld [vmem:[%s1 + $0x70] sm:$0xff]
      %v256 = vld [vmem:[%s1 + $0x78] sm:$0xff]
      %v257 = vld [vmem:[%s1 + $0x80] sm:$0xff]
      %v258 = vld [vmem:[%s1 + $0x88] sm:$0xff]
      %v259 = vld [vmem:[%s1 + $0x90] sm:$0xff]
      %v260 = vld [vmem:[%s1 + $0x98] sm:$0xff]
      %v261 = vld [vmem:[%s1 + $0xa0] sm:$0xff]
      %v262 = vld [vmem:[%s1 + $0xa8] sm:$0xff]
      %v263 = vld [vmem:[%s1 + $0xb0] sm:$0xff]
      %v264 = vld [vmem:[%s1 + $0xb8] sm:$0xff]
      %v265 = vld [vmem:[%s1 + $0xc0] sm:$0xff]
      %v266 = vld [vmem:[%s1 + $0xc8] sm:$0xff]
      %v267 = vld [vmem:[%s1 + $0xd0] sm:$0xff]
      %v268 = vld [vmem:[%s1 + $0xd8] sm:$0xff]
      %v269 = vld [vmem:[%s1 + $0xe0] sm:$0xff]
      %v270 = vld [vmem:[%s1 + $0xe8] sm:$0xff]
      %v271 = vld [vmem:[%s1 + $0xf0] sm:$0xff]
      %v272 = vld [vmem:[%s1 + $0xf8] sm:$0xff]
      %v273 = vld [vmem:[%s2] sm:$0xf]
      %v275 = vlaneseq
      %v276 = vshrl.u32 %v275, 7
      %v277 = vsub.s32 0, %v276
      %v278 = vrot.slane %v273, %v277
      %v279 = vlaneseq
      %v280 = vshrl.u32 %v279, 7
      %v281 = vsub.s32 1, %v280
      %v282 = vrot.slane %v273, %v281
      %v283 = vlaneseq
      %v284 = vshrl.u32 %v283, 7
      %v285 = vsub.s32 2, %v284
      %v286 = vrot.slane %v273, %v285
      %v287 = vlaneseq
      %v288 = vshrl.u32 %v287, 7
      %v289 = vsub.s32 3, %v288
      %v290 = vrot.slane %v273, %v289
      %v327 = vunpack.c.l.b16 %v241
      %v328 = vunpack.c.h.b16 %v241
      %v329 = vunpack.c.l.b16 %v242
      %v330 = vunpack.c.h.b16 %v242
      %v331 = vunpack.c.l.b16 %v243
      %v332 = vunpack.c.h.b16 %v243
      %v333 = vunpack.c.l.b16 %v244
      %v334 = vunpack.c.h.b16 %v244
      %v335 = vunpack.c.l.b16 %v245
      %v336 = vunpack.c.h.b16 %v245
      %v337 = vunpack.c.l.b16 %v246
      %v338 = vunpack.c.h.b16 %v246
      %v339 = vunpack.c.l.b16 %v247
      %v340 = vunpack.c.h.b16 %v247
      %v341 = vunpack.c.l.b16 %v248
      %v342 = vunpack.c.h.b16 %v248
      %v343 = vunpack.c.l.b16 %v249
      %v344 = vunpack.c.h.b16 %v249
      %v345 = vunpack.c.l.b16 %v250
      %v346 = vunpack.c.h.b16 %v250
      %v347 = vunpack.c.l.b16 %v251
      %v348 = vunpack.c.h.b16 %v251
      %v349 = vunpack.c.l.b16 %v252
      %v350 = vunpack.c.h.b16 %v252
      %v351 = vunpack.c.l.b16 %v253
      %v352 = vunpack.c.h.b16 %v253
      %v353 = vunpack.c.l.b16 %v254
      %v354 = vunpack.c.h.b16 %v254
      %v355 = vunpack.c.l.b16 %v255
      %v356 = vunpack.c.h.b16 %v255
      %v357 = vunpack.c.l.b16 %v256
      %v358 = vunpack.c.h.b16 %v256
      %v359 = vunpack.c.l.b16 %v257
      %v360 = vunpack.c.h.b16 %v257
      %v361 = vunpack.c.l.b16 %v258
      %v362 = vunpack.c.h.b16 %v258
      %v363 = vunpack.c.l.b16 %v259
      %v364 = vunpack.c.h.b16 %v259
      %v365 = vunpack.c.l.b16 %v260
      %v366 = vunpack.c.h.b16 %v260
      %v367 = vunpack.c.l.b16 %v261
      %v368 = vunpack.c.h.b16 %v261
      %v369 = vunpack.c.l.b16 %v262
      %v370 = vunpack.c.h.b16 %v262
      %v371 = vunpack.c.l.b16 %v263
      %v372 = vunpack.c.h.b16 %v263
      %v373 = vunpack.c.l.b16 %v264
      %v374 = vunpack.c.h.b16 %v264
      %v375 = vunpack.c.l.b16 %v265
      %v376 = vunpack.c.h.b16 %v265
      %v377 = vunpack.c.l.b16 %v266
      %v378 = vunpack.c.h.b16 %v266
      %v379 = vunpack.c.l.b16 %v267
      %v380 = vunpack.c.h.b16 %v267
      %v381 = vunpack.c.l.b16 %v268
      %v382 = vunpack.c.h.b16 %v268
      %v383 = vunpack.c.l.b16 %v269
      %v384 = vunpack.c.h.b16 %v269
      %v385 = vunpack.c.l.b16 %v270
      %v386 = vunpack.c.h.b16 %v270
      %v387 = vunpack.c.l.b16 %v271
      %v388 = vunpack.c.h.b16 %v271
      %v389 = vunpack.c.l.b16 %v272
      %v390 = vunpack.c.h.b16 %v272
      %v391 = vpack.c.b16 %v331, %v327
      %v392 = vpack.c.b16 %v332, %v328
      %v393 = vpack.c.b16 %v333, %v329
      %v394 = vpack.c.b16 %v334, %v330
      %v395 = vpack.c.b16 %v339, %v335
      %v396 = vpack.c.b16 %v340, %v336
      %v397 = vpack.c.b16 %v341, %v337
      %v398 = vpack.c.b16 %v342, %v338
      %v399 = vpack.c.b16 %v347, %v343
      %v400 = vpack.c.b16 %v348, %v344
      %v401 = vpack.c.b16 %v349, %v345
      %v402 = vpack.c.b16 %v350, %v346
      %v403 = vpack.c.b16 %v355, %v351
      %v404 = vpack.c.b16 %v356, %v352
      %v405 = vpack.c.b16 %v357, %v353
      %v406 = vpack.c.b16 %v358, %v354
      %v407 = vpack.c.b16 %v363, %v359
      %v408 = vpack.c.b16 %v364, %v360
      %v409 = vpack.c.b16 %v365, %v361
      %v410 = vpack.c.b16 %v366, %v362
      %v411 = vpack.c.b16 %v371, %v367
      %v412 = vpack.c.b16 %v372, %v368
      %v413 = vpack.c.b16 %v373, %v369
      %v414 = vpack.c.b16 %v374, %v370
      %v415 = vpack.c.b16 %v379, %v375
      %v416 = vpack.c.b16 %v380, %v376
      %v417 = vpack.c.b16 %v381, %v377
      %v418 = vpack.c.b16 %v382, %v378
      %v419 = vpack.c.b16 %v387, %v383
      %v420 = vpack.c.b16 %v388, %v384
      %v421 = vpack.c.b16 %v389, %v385
      %v422 = vpack.c.b16 %v390, %v386
      %455 = vmatprep.subr.bf16.mxu0 %v392
      %456 = vmatpush1.bf16.msra.mxu0 %v391
      %457 = vmatprep.subr.bf16.mxu0 %v396
      %458 = vmatpush1.bf16.msra.mxu0 %v395
      %459 = vmatprep.subr.bf16.mxu0 %v400
      %460 = vmatpush1.bf16.msra.mxu0 %v399
      %461 = vmatprep.subr.bf16.mxu0 %v404
      %462 = vmatpush1.bf16.msra.mxu0 %v403
      %463 = vmatprep.subr.bf16.mxu0 %v408
      %464 = vmatpush1.bf16.msra.mxu0 %v407
      %465 = vmatprep.subr.bf16.mxu0 %v412
      %466 = vmatpush1.bf16.msra.mxu0 %v411
      %467 = vmatprep.subr.bf16.mxu0 %v416
      %468 = vmatpush1.bf16.msra.mxu0 %v415
      %469 = vmatprep.subr.bf16.mxu0 %v420
      %470 = vmatpush1.bf16.msra.mxu0 %v419
      %471 = vmatprep.subr.bf16.mxu0 0
      %472 = vmatpush1.bf16.msra.mxu0 0
      %473 = vmatprep.subr.bf16.mxu0 0
      %474 = vmatpush1.bf16.msra.mxu0 0
      %475 = vmatprep.subr.bf16.mxu0 0
      %476 = vmatpush1.bf16.msra.mxu0 0
      %477 = vmatprep.subr.bf16.mxu0 0
      %478 = vmatpush1.bf16.msra.mxu0 0
      %479 = vmatprep.subr.bf16.mxu0 0
      %480 = vmatpush1.bf16.msra.mxu0 0
      %481 = vmatprep.subr.bf16.mxu0 0
      %482 = vmatpush1.bf16.msra.mxu0 0
      %483 = vmatprep.subr.bf16.mxu0 0
      %484 = vmatpush1.bf16.msra.mxu0 0
      %485 = vmatprep.subr.bf16.mxu0 0
      %486 = vmatpush1.bf16.msra.mxu0 0
      %487 = vmatprep.mubr.bf16.mxu0 0
      %488 = vmatmul.mubr.bf16.gmra.mrb[0].mxu0 %v237
      %v489 = vpop.f32.mrb[0].mxu0
      %v490 = vadd.f32 %v278, %v489
      %v491 = vpop.f32.mrb[0].mxu0
      %v492 = vadd.f32 %v282, %v491
      %v493 = vpop.f32.mrb[0].mxu0
      %v494 = vadd.f32 %v278, %v493
      %v495 = vpop.f32.mrb[0].mxu0
      %v496 = vadd.f32 %v282, %v495
      %497 = vmatprep.mubr.bf16.mxu0 0
      %498 = vmatmul.mubr.bf16.gmra.mrb[0].mxu0 %v238
      %v499 = vpop.f32.mrb[0].mxu0
      %v500 = vadd.f32 %v278, %v499
      %v501 = vpop.f32.mrb[0].mxu0
      %v502 = vadd.f32 %v282, %v501
      %v503 = vpop.f32.mrb[0].mxu0
      %v504 = vadd.f32 %v278, %v503
      %v505 = vpop.f32.mrb[0].mxu0
      %v506 = vadd.f32 %v282, %v505
      %507 = vmatprep.mubr.bf16.mxu0 0
      %508 = vmatmul.mubr.bf16.gmra.mrb[0].mxu0 %v239
      %v509 = vpop.f32.mrb[0].mxu0
      %v510 = vadd.f32 %v278, %v509
      %v511 = vpop.f32.mrb[0].mxu0
      %v512 = vadd.f32 %v282, %v511
      %v513 = vpop.f32.mrb[0].mxu0
      %v514 = vadd.f32 %v278, %v513
      %v515 = vpop.f32.mrb[0].mxu0
      %v516 = vadd.f32 %v282, %v515
      %517 = vmatprep.mubr.bf16.mxu0 0
      %518 = vmatmul.mubr.bf16.gmra.mrb[0].mxu0 %v240
      %v519 = vpop.f32.mrb[0].mxu0
      %v520 = vadd.f32 %v278, %v519
      %v521 = vpop.f32.mrb[0].mxu0
      %v522 = vadd.f32 %v282, %v521
      %v523 = vpop.f32.mrb[0].mxu0
      %v524 = vadd.f32 %v278, %v523
      %v525 = vpop.f32.mrb[0].mxu0
      %v526 = vadd.f32 %v282, %v525
      %527 = vdwg.mxu0
      %528 = vmatprep.subr.bf16.mxu0 %v394
      %529 = vmatpush1.bf16.msra.mxu0 %v393
      %530 = vmatprep.subr.bf16.mxu0 %v398
      %531 = vmatpush1.bf16.msra.mxu0 %v397
      %532 = vmatprep.subr.bf16.mxu0 %v402
      %533 = vmatpush1.bf16.msra.mxu0 %v401
      %534 = vmatprep.subr.bf16.mxu0 %v406
      %535 = vmatpush1.bf16.msra.mxu0 %v405
      %536 = vmatprep.subr.bf16.mxu0 %v410
      %537 = vmatpush1.bf16.msra.mxu0 %v409
      %538 = vmatprep.subr.bf16.mxu0 %v414
      %539 = vmatpush1.bf16.msra.mxu0 %v413
      %540 = vmatprep.subr.bf16.mxu0 %v418
      %541 = vmatpush1.bf16.msra.mxu0 %v417
      %542 = vmatprep.subr.bf16.mxu0 %v422
      %543 = vmatpush1.bf16.msra.mxu0 %v421
      %544 = vmatprep.subr.bf16.mxu0 0
      %545 = vmatpush1.bf16.msra.mxu0 0
      %546 = vmatprep.subr.bf16.mxu0 0
      %547 = vmatpush1.bf16.msra.mxu0 0
      %548 = vmatprep.subr.bf16.mxu0 0
      %549 = vmatpush1.bf16.msra.mxu0 0
      %550 = vmatprep.subr.bf16.mxu0 0
      %551 = vmatpush1.bf16.msra.mxu0 0
      %552 = vmatprep.subr.bf16.mxu0 0
      %553 = vmatpush1.bf16.msra.mxu0 0
      %554 = vmatprep.subr.bf16.mxu0 0
      %555 = vmatpush1.bf16.msra.mxu0 0
      %556 = vmatprep.subr.bf16.mxu0 0
      %557 = vmatpush1.bf16.msra.mxu0 0
      %558 = vmatprep.subr.bf16.mxu0 0
      %559 = vmatpush1.bf16.msra.mxu0 0
      %560 = vmatprep.mubr.bf16.mxu0 0
      %561 = vmatmul.mubr.bf16.gmra.mrb[0].mxu0 %v237
      %v562 = vpop.f32.mrb[0].mxu0
      %v563 = vadd.f32 %v286, %v562
      %v564 = vpop.f32.mrb[0].mxu0
      %v565 = vadd.f32 %v290, %v564
      %v566 = vpop.f32.mrb[0].mxu0
      %v567 = vadd.f32 %v286, %v566
      %v568 = vpop.f32.mrb[0].mxu0
      %v569 = vadd.f32 %v290, %v568
      %570 = vmatprep.mubr.bf16.mxu0 0
      %571 = vmatmul.mubr.bf16.gmra.mrb[0].mxu0 %v238
      %v572 = vpop.f32.mrb[0].mxu0
      %v573 = vadd.f32 %v286, %v572
      %v574 = vpop.f32.mrb[0].mxu0
      %v575 = vadd.f32 %v290, %v574
      %v576 = vpop.f32.mrb[0].mxu0
      %v577 = vadd.f32 %v286, %v576
      %v578 = vpop.f32.mrb[0].mxu0
      %v579 = vadd.f32 %v290, %v578
      %580 = vmatprep.mubr.bf16.mxu0 0
      %581 = vmatmul.mubr.bf16.gmra.mrb[0].mxu0 %v239
      %v582 = vpop.f32.mrb[0].mxu0
      %v583 = vadd.f32 %v286, %v582
      %v584 = vpop.f32.mrb[0].mxu0
      %v585 = vadd.f32 %v290, %v584
      %v586 = vpop.f32.mrb[0].mxu0
      %v587 = vadd.f32 %v286, %v586
      %v588 = vpop.f32.mrb[0].mxu0
      %v589 = vadd.f32 %v290, %v588
      %590 = vmatprep.mubr.bf16.mxu0 0
      %591 = vmatmul.mubr.bf16.gmra.mrb[0].mxu0 %v240
      %v592 = vpop.f32.mrb[0].mxu0
      %v593 = vadd.f32 %v286, %v592
      %v594 = vpop.f32.mrb[0].mxu0
      %v595 = vadd.f32 %v290, %v594
      %v596 = vpop.f32.mrb[0].mxu0
      %v597 = vadd.f32 %v286, %v596
      %v598 = vpop.f32.mrb[0].mxu0
      %v599 = vadd.f32 %v290, %v598
      %600 = vdwg.mxu0
      %v601 = vmax.f32 %v490, 0.0
      %v602 = vmax.f32 %v492, 0.0
      %v603 = vmax.f32 %v563, 0.0
      %v604 = vmax.f32 %v565, 0.0
      %v605 = vmax.f32 %v494, 0.0
      %v606 = vmax.f32 %v496, 0.0
      %v607 = vmax.f32 %v567, 0.0
      %v608 = vmax.f32 %v569, 0.0
      %v609 = vmax.f32 %v500, 0.0
      %v610 = vmax.f32 %v502, 0.0
      %v611 = vmax.f32 %v573, 0.0
      %v612 = vmax.f32 %v575, 0.0
      %v613 = vmax.f32 %v504, 0.0
      %v614 = vmax.f32 %v506, 0.0
      %v615 = vmax.f32 %v577, 0.0
      %v616 = vmax.f32 %v579, 0.0
      %v617 = vmax.f32 %v510, 0.0
      %v618 = vmax.f32 %v512, 0.0
      %v619 = vmax.f32 %v583, 0.0
      %v620 = vmax.f32 %v585, 0.0
      %v621 = vmax.f32 %v514, 0.0
      %v622 = vmax.f32 %v516, 0.0
      %v623 = vmax.f32 %v587, 0.0
      %v624 = vmax.f32 %v589, 0.0
      %v625 = vmax.f32 %v520, 0.0
      %v626 = vmax.f32 %v522, 0.0
      %v627 = vmax.f32 %v593, 0.0
      %v628 = vmax.f32 %v595, 0.0
      %v629 = vmax.f32 %v524, 0.0
      %v630 = vmax.f32 %v526, 0.0
      %v631 = vmax.f32 %v597, 0.0
      %v632 = vmax.f32 %v599, 0.0
      %v633 = vpack.c.bf16 %v605, %v601
      %v634 = vpack.c.bf16 %v606, %v602
      %v635 = vpack.c.bf16 %v607, %v603
      %v636 = vpack.c.bf16 %v608, %v604
      %v637 = vpack.c.bf16 %v613, %v609
      %v638 = vpack.c.bf16 %v614, %v610
      %v639 = vpack.c.bf16 %v615, %v611
      %v640 = vpack.c.bf16 %v616, %v612
      %v641 = vpack.c.bf16 %v621, %v617
      %v642 = vpack.c.bf16 %v622, %v618
      %v643 = vpack.c.bf16 %v623, %v619
      %v644 = vpack.c.bf16 %v624, %v620
      %v645 = vpack.c.bf16 %v629, %v625
      %v646 = vpack.c.bf16 %v630, %v626
      %v647 = vpack.c.bf16 %v631, %v627
      %v648 = vpack.c.bf16 %v632, %v628
      %v649 = vld [vmem:[%s3] sm:$0xf]
      %v650 = vld [vmem:[%s3 + $0x4] sm:$0xf]
      %v651 = vld [vmem:[%s3 + $0x8] sm:$0xf]
      %v652 = vld [vmem:[%s3 + $0xc] sm:$0xf]
      %v653 = vld [vmem:[%s3 + $0x10] sm:$0xf]
      %v654 = vld [vmem:[%s3 + $0x14] sm:$0xf]
      %v655 = vld [vmem:[%s3 + $0x18] sm:$0xf]
      %v656 = vld [vmem:[%s3 + $0x1c] sm:$0xf]
      %v657 = vld [vmem:[%s3 + $0x20] sm:$0xf]
      %v658 = vld [vmem:[%s3 + $0x24] sm:$0xf]
      %v659 = vld [vmem:[%s3 + $0x28] sm:$0xf]
      %v660 = vld [vmem:[%s3 + $0x2c] sm:$0xf]
      %v661 = vld [vmem:[%s3 + $0x30] sm:$0xf]
      %v662 = vld [vmem:[%s3 + $0x34] sm:$0xf]
      %v663 = vld [vmem:[%s3 + $0x38] sm:$0xf]
      %v664 = vld [vmem:[%s3 + $0x3c] sm:$0xf]
      %v665 = vld [vmem:[%s3 + $0x40] sm:$0xf]
      %v666 = vld [vmem:[%s3 + $0x44] sm:$0xf]
      %v667 = vld [vmem:[%s3 + $0x48] sm:$0xf]
      %v668 = vld [vmem:[%s3 + $0x4c] sm:$0xf]
      %v669 = vld [vmem:[%s3 + $0x50] sm:$0xf]
      %v670 = vld [vmem:[%s3 + $0x54] sm:$0xf]
      %v671 = vld [vmem:[%s3 + $0x58] sm:$0xf]
      %v672 = vld [vmem:[%s3 + $0x5c] sm:$0xf]
      %v673 = vld [vmem:[%s3 + $0x60] sm:$0xf]
      %v674 = vld [vmem:[%s3 + $0x64] sm:$0xf]
      %v675 = vld [vmem:[%s3 + $0x68] sm:$0xf]
      %v676 = vld [vmem:[%s3 + $0x6c] sm:$0xf]
      %v677 = vld [vmem:[%s3 + $0x70] sm:$0xf]
      %v678 = vld [vmem:[%s3 + $0x74] sm:$0xf]
      %v679 = vld [vmem:[%s3 + $0x78] sm:$0xf]
      %v680 = vld [vmem:[%s3 + $0x7c] sm:$0xf]
      %v681 = vld [vmem:[%s3 + $0x80] sm:$0xf]
      %v682 = vld [vmem:[%s3 + $0x84] sm:$0xf]
      %v683 = vld [vmem:[%s3 + $0x88] sm:$0xf]
      %v684 = vld [vmem:[%s3 + $0x8c] sm:$0xf]
      %v685 = vld [vmem:[%s3 + $0x90] sm:$0xf]
      %v686 = vld [vmem:[%s3 + $0x94] sm:$0xf]
      %v687 = vld [vmem:[%s3 + $0x98] sm:$0xf]
      %v688 = vld [vmem:[%s3 + $0x9c] sm:$0xf]
      %v689 = vld [vmem:[%s3 + $0xa0] sm:$0xf]
      %v690 = vld [vmem:[%s3 + $0xa4] sm:$0xf]
      %v691 = vld [vmem:[%s3 + $0xa8] sm:$0xf]
      %v692 = vld [vmem:[%s3 + $0xac] sm:$0xf]
      %v693 = vld [vmem:[%s3 + $0xb0] sm:$0xf]
      %v694 = vld [vmem:[%s3 + $0xb4] sm:$0xf]
      %v695 = vld [vmem:[%s3 + $0xb8] sm:$0xf]
      %v696 = vld [vmem:[%s3 + $0xbc] sm:$0xf]
      %v697 = vld [vmem:[%s3 + $0xc0] sm:$0xf]
      %v698 = vld [vmem:[%s3 + $0xc4] sm:$0xf]
      %v699 = vld [vmem:[%s3 + $0xc8] sm:$0xf]
      %v700 = vld [vmem:[%s3 + $0xcc] sm:$0xf]
      %v701 = vld [vmem:[%s3 + $0xd0] sm:$0xf]
      %v702 = vld [vmem:[%s3 + $0xd4] sm:$0xf]
      %v703 = vld [vmem:[%s3 + $0xd8] sm:$0xf]
      %v704 = vld [vmem:[%s3 + $0xdc] sm:$0xf]
      %v705 = vld [vmem:[%s3 + $0xe0] sm:$0xf]
      %v706 = vld [vmem:[%s3 + $0xe4] sm:$0xf]
      %v707 = vld [vmem:[%s3 + $0xe8] sm:$0xf]
      %v708 = vld [vmem:[%s3 + $0xec] sm:$0xf]
      %v709 = vld [vmem:[%s3 + $0xf0] sm:$0xf]
      %v710 = vld [vmem:[%s3 + $0xf4] sm:$0xf]
      %v711 = vld [vmem:[%s3 + $0xf8] sm:$0xf]
      %v712 = vld [vmem:[%s3 + $0xfc] sm:$0xf]
      %v713 = vld [vmem:[%s4] sm:$0x1]
      %v715 = vlaneseq
      %v716 = vshrl.u32 %v715, 7
      %v717 = vsub.s32 0, %v716
      %v718 = vrot.slane %v713, %v717
      %v784 = vunpack.c.l.b16 %v649
      %v785 = vunpack.c.l.b16 %v650
      %v786 = vunpack.c.l.b16 %v651
      %v787 = vunpack.c.l.b16 %v652
      %v788 = vunpack.c.l.b16 %v653
      %v789 = vunpack.c.l.b16 %v654
      %v790 = vunpack.c.l.b16 %v655
      %v791 = vunpack.c.l.b16 %v656
      %v792 = vunpack.c.l.b16 %v657
      %v793 = vunpack.c.l.b16 %v658
      %v794 = vunpack.c.l.b16 %v659
      %v795 = vunpack.c.l.b16 %v660
      %v796 = vunpack.c.l.b16 %v661
      %v797 = vunpack.c.l.b16 %v662
      %v798 = vunpack.c.l.b16 %v663
      %v799 = vunpack.c.l.b16 %v664
      %v800 = vunpack.c.l.b16 %v665
      %v801 = vunpack.c.l.b16 %v666
      %v802 = vunpack.c.l.b16 %v667
      %v803 = vunpack.c.l.b16 %v668
      %v804 = vunpack.c.l.b16 %v669
      %v805 = vunpack.c.l.b16 %v670
      %v806 = vunpack.c.l.b16 %v671
      %v807 = vunpack.c.l.b16 %v672
      %v808 = vunpack.c.l.b16 %v673
      %v809 = vunpack.c.l.b16 %v674
      %v810 = vunpack.c.l.b16 %v675
      %v811 = vunpack.c.l.b16 %v676
      %v812 = vunpack.c.l.b16 %v677
      %v813 = vunpack.c.l.b16 %v678
      %v814 = vunpack.c.l.b16 %v679
      %v815 = vunpack.c.l.b16 %v680
      %v816 = vunpack.c.l.b16 %v681
      %v817 = vunpack.c.l.b16 %v682
      %v818 = vunpack.c.l.b16 %v683
      %v819 = vunpack.c.l.b16 %v684
      %v820 = vunpack.c.l.b16 %v685
      %v821 = vunpack.c.l.b16 %v686
      %v822 = vunpack.c.l.b16 %v687
      %v823 = vunpack.c.l.b16 %v688
      %v824 = vunpack.c.l.b16 %v689
      %v825 = vunpack.c.l.b16 %v690
      %v826 = vunpack.c.l.b16 %v691
      %v827 = vunpack.c.l.b16 %v692
      %v828 = vunpack.c.l.b16 %v693
      %v829 = vunpack.c.l.b16 %v694
      %v830 = vunpack.c.l.b16 %v695
      %v831 = vunpack.c.l.b16 %v696
      %v832 = vunpack.c.l.b16 %v697
      %v833 = vunpack.c.l.b16 %v698
      %v834 = vunpack.c.l.b16 %v699
      %v835 = vunpack.c.l.b16 %v700
      %v836 = vunpack.c.l.b16 %v701
      %v837 = vunpack.c.l.b16 %v702
      %v838 = vunpack.c.l.b16 %v703
      %v839 = vunpack.c.l.b16 %v704
      %v840 = vunpack.c.l.b16 %v705
      %v841 = vunpack.c.l.b16 %v706
      %v842 = vunpack.c.l.b16 %v707
      %v843 = vunpack.c.l.b16 %v708
      %v844 = vunpack.c.l.b16 %v709
      %v845 = vunpack.c.l.b16 %v710
      %v846 = vunpack.c.l.b16 %v711
      %v847 = vunpack.c.l.b16 %v712
      %v848 = vpack.c.b16 %v785, %v784
      %v849 = vpack.c.b16 %v787, %v786
      %v850 = vpack.c.b16 %v789, %v788
      %v851 = vpack.c.b16 %v791, %v790
      %v852 = vpack.c.b16 %v793, %v792
      %v853 = vpack.c.b16 %v795, %v794
      %v854 = vpack.c.b16 %v797, %v796
      %v855 = vpack.c.b16 %v799, %v798
      %v856 = vpack.c.b16 %v801, %v800
      %v857 = vpack.c.b16 %v803, %v802
      %v858 = vpack.c.b16 %v805, %v804
      %v859 = vpack.c.b16 %v807, %v806
      %v860 = vpack.c.b16 %v809, %v808
      %v861 = vpack.c.b16 %v811, %v810
      %v862 = vpack.c.b16 %v813, %v812
      %v863 = vpack.c.b16 %v815, %v814
      %v864 = vpack.c.b16 %v817, %v816
      %v865 = vpack.c.b16 %v819, %v818
      %v866 = vpack.c.b16 %v821, %v820
      %v867 = vpack.c.b16 %v823, %v822
      %v868 = vpack.c.b16 %v825, %v824
      %v869 = vpack.c.b16 %v827, %v826
      %v870 = vpack.c.b16 %v829, %v828
      %v871 = vpack.c.b16 %v831, %v830
      %v872 = vpack.c.b16 %v833, %v832
      %v873 = vpack.c.b16 %v835, %v834
      %v874 = vpack.c.b16 %v837, %v836
      %v875 = vpack.c.b16 %v839, %v838
      %v876 = vpack.c.b16 %v841, %v840
      %v877 = vpack.c.b16 %v843, %v842
      %v878 = vpack.c.b16 %v845, %v844
      %v879 = vpack.c.b16 %v847, %v846
      %912 = vmatprep.subr.bf16.mxu0 0
      %913 = vmatpush1.bf16.msra.mxu0 %v848
      %914 = vmatprep.subr.bf16.mxu0 0
      %915 = vmatpush1.bf16.msra.mxu0 %v849
      %916 = vmatprep.subr.bf16.mxu0 0
      %917 = vmatpush1.bf16.msra.mxu0 %v850
      %918 = vmatprep.subr.bf16.mxu0 0
      %919 = vmatpush1.bf16.msra.mxu0 %v851
      %920 = vmatprep.subr.bf16.mxu0 0
      %921 = vmatpush1.bf16.msra.mxu0 %v852
      %922 = vmatprep.subr.bf16.mxu0 0
      %923 = vmatpush1.bf16.msra.mxu0 %v853
      %924 = vmatprep.subr.bf16.mxu0 0
      %925 = vmatpush1.bf16.msra.mxu0 %v854
      %926 = vmatprep.subr.bf16.mxu0 0
      %927 = vmatpush1.bf16.msra.mxu0 %v855
      %928 = vmatprep.subr.bf16.mxu0 0
      %929 = vmatpush1.bf16.msra.mxu0 %v856
      %930 = vmatprep.subr.bf16.mxu0 0
      %931 = vmatpush1.bf16.msra.mxu0 %v857
      %932 = vmatprep.subr.bf16.mxu0 0
      %933 = vmatpush1.bf16.msra.mxu0 %v858
      %934 = vmatprep.subr.bf16.mxu0 0
      %935 = vmatpush1.bf16.msra.mxu0 %v859
      %936 = vmatprep.subr.bf16.mxu0 0
      %937 = vmatpush1.bf16.msra.mxu0 %v860
      %938 = vmatprep.subr.bf16.mxu0 0
      %939 = vmatpush1.bf16.msra.mxu0 %v861
      %940 = vmatprep.subr.bf16.mxu0 0
      %941 = vmatpush1.bf16.msra.mxu0 %v862
      %942 = vmatprep.subr.bf16.mxu0 0
      %943 = vmatpush1.bf16.msra.mxu0 %v863
      %944 = vmatprep.mubr.bf16.mxu0 %v634
      %945 = vmatmul.mubr.bf16.gmra.mrb[0].mxu0 %v633
      %v946 = vpop.f32.mrb[0].mxu0
      %v947 = vadd.f32 %v718, %v946
      %v948 = vpop.f32.mrb[0].mxu0
      %v949 = vpop.f32.mrb[0].mxu0
      %v950 = vadd.f32 %v718, %v949
      %v951 = vpop.f32.mrb[0].mxu0
      %952 = vmatprep.mubr.bf16.mxu0 %v638
      %953 = vmatmul.mubr.bf16.gmra.mrb[0].mxu0 %v637
      %v954 = vpop.f32.mrb[0].mxu0
      %v955 = vadd.f32 %v718, %v954
      %v956 = vpop.f32.mrb[0].mxu0
      %v957 = vpop.f32.mrb[0].mxu0
      %v958 = vadd.f32 %v718, %v957
      %v959 = vpop.f32.mrb[0].mxu0
      %960 = vmatprep.mubr.bf16.mxu0 %v642
      %961 = vmatmul.mubr.bf16.gmra.mrb[0].mxu0 %v641
      %v962 = vpop.f32.mrb[0].mxu0
      %v963 = vadd.f32 %v718, %v962
      %v964 = vpop.f32.mrb[0].mxu0
      %v965 = vpop.f32.mrb[0].mxu0
      %v966 = vadd.f32 %v718, %v965
      %v967 = vpop.f32.mrb[0].mxu0
      %968 = vmatprep.mubr.bf16.mxu0 %v646
      %969 = vmatmul.mubr.bf16.gmra.mrb[0].mxu0 %v645
      %v970 = vpop.f32.mrb[0].mxu0
      %v971 = vadd.f32 %v718, %v970
      %v972 = vpop.f32.mrb[0].mxu0
      %v973 = vpop.f32.mrb[0].mxu0
      %v974 = vadd.f32 %v718, %v973
      %v975 = vpop.f32.mrb[0].mxu0
      %976 = vdwg.mxu0
      %977 = vmatprep.subr.bf16.mxu0 0
      %978 = vmatpush1.bf16.msra.mxu0 %v864
      %979 = vmatprep.subr.bf16.mxu0 0
      %980 = vmatpush1.bf16.msra.mxu0 %v865
      %981 = vmatprep.subr.bf16.mxu0 0
      %982 = vmatpush1.bf16.msra.mxu0 %v866
      %983 = vmatprep.subr.bf16.mxu0 0
      %984 = vmatpush1.bf16.msra.mxu0 %v867
      %985 = vmatprep.subr.bf16.mxu0 0
      %986 = vmatpush1.bf16.msra.mxu0 %v868
      %987 = vmatprep.subr.bf16.mxu0 0
      %988 = vmatpush1.bf16.msra.mxu0 %v869
      %989 = vmatprep.subr.bf16.mxu0 0
      %990 = vmatpush1.bf16.msra.mxu0 %v870
      %991 = vmatprep.subr.bf16.mxu0 0
      %992 = vmatpush1.bf16.msra.mxu0 %v871
      %993 = vmatprep.subr.bf16.mxu0 0
      %994 = vmatpush1.bf16.msra.mxu0 %v872
      %995 = vmatprep.subr.bf16.mxu0 0
      %996 = vmatpush1.bf16.msra.mxu0 %v873
      %997 = vmatprep.subr.bf16.mxu0 0
      %998 = vmatpush1.bf16.msra.mxu0 %v874
      %999 = vmatprep.subr.bf16.mxu0 0
      %1000 = vmatpush1.bf16.msra.mxu0 %v875
      %1001 = vmatprep.subr.bf16.mxu0 0
      %1002 = vmatpush1.bf16.msra.mxu0 %v876
      %1003 = vmatprep.subr.bf16.mxu0 0
      %1004 = vmatpush1.bf16.msra.mxu0 %v877
      %1005 = vmatprep.subr.bf16.mxu0 0
      %1006 = vmatpush1.bf16.msra.mxu0 %v878
      %1007 = vmatprep.subr.bf16.mxu0 0
      %1008 = vmatpush1.bf16.msra.mxu0 %v879
      %1009 = vmatprep.mubr.bf16.mxu0 %v636
      %1010 = vmatmul.mubr.bf16.gmra.mrb[0].mxu0 %v635
      %v1011 = vpop.f32.mrb[0].mxu0
      %v1012 = vadd.f32 %v947, %v1011
      %v1013 = vpop.f32.mrb[0].mxu0
      %v1014 = vpop.f32.mrb[0].mxu0
      %v1015 = vadd.f32 %v950, %v1014
      %v1016 = vpop.f32.mrb[0].mxu0
      %1017 = vmatprep.mubr.bf16.mxu0 %v640
      %1018 = vmatmul.mubr.bf16.gmra.mrb[0].mxu0 %v639
      %v1019 = vpop.f32.mrb[0].mxu0
      %v1020 = vadd.f32 %v955, %v1019
      %v1021 = vpop.f32.mrb[0].mxu0
      %v1022 = vpop.f32.mrb[0].mxu0
      %v1023 = vadd.f32 %v958, %v1022
      %v1024 = vpop.f32.mrb[0].mxu0
      %1025 = vmatprep.mubr.bf16.mxu0 %v644
      %1026 = vmatmul.mubr.bf16.gmra.mrb[0].mxu0 %v643
      %v1027 = vpop.f32.mrb[0].mxu0
      %v1028 = vadd.f32 %v963, %v1027
      %v1029 = vpop.f32.mrb[0].mxu0
      %v1030 = vpop.f32.mrb[0].mxu0
      %v1031 = vadd.f32 %v966, %v1030
      %v1032 = vpop.f32.mrb[0].mxu0
      %1033 = vmatprep.mubr.bf16.mxu0 %v648
      %1034 = vmatmul.mubr.bf16.gmra.mrb[0].mxu0 %v647
      %v1035 = vpop.f32.mrb[0].mxu0
      %v1036 = vadd.f32 %v971, %v1035
      %v1037 = vpop.f32.mrb[0].mxu0
      %v1038 = vpop.f32.mrb[0].mxu0
      %v1039 = vadd.f32 %v974, %v1038
      %v1040 = vpop.f32.mrb[0].mxu0
      %1041 = vdwg.mxu0
      %vm1042 = vcmask 261120
      %1043 = vst.msk [vmem:[%s226] sm:$0xff] %vm1042, %v1012
      %1044 = vst.msk [vmem:[%s226 + $0x8] sm:$0xff] %vm1042, %v1015
      %1045 = vst.msk [vmem:[%s226 + $0x10] sm:$0xff] %vm1042, %v1020
      %1046 = vst.msk [vmem:[%s226 + $0x18] sm:$0xff] %vm1042, %v1023
      %1047 = vst.msk [vmem:[%s226 + $0x20] sm:$0xff] %vm1042, %v1028
      %1048 = vst.msk [vmem:[%s226 + $0x28] sm:$0xff] %vm1042, %v1031
      %1049 = vst.msk [vmem:[%s226 + $0x30] sm:$0xff] %vm1042, %v1036
      %1050 = vst.msk [vmem:[%s226 + $0x38] sm:$0xff] %vm1042, %v1039
      %s1051 = smul.u32 8, %s16
      %p1052 = scmp.lt.s32.totalorder %s1051, 15
      %s1053 = scalar_select %p1052, %s1051, 15
      %s1054 = smul.addr %s1053, 8
      %s1055 = scalar_lea.vmem %s5, %s1054
      // Predicated region
      $region41: #{vanet_forward.1} parent=39 // pred_check
        %p1056 = pneg %p144
      $region42: #{vanet_forward.1} parent=39 // pred_check_branch
        %1058 = sbr.rel (%p1056) target = $region44
      $region43: #{vanet_forward.1} parent=39 // pred_region
        %s1059 = smul.u32 8, %s16
      $region44: #{vanet_forward.1} parent=39 // pred_fallthru
        _
    $region40: #{vanet_forward.1} parent=5 // pred_fallthru
      _
    %p1060 = scmp.le.s32.totalorder 2, %s11
    // Predicated region
    $region45: #{vanet_forward.1} parent=5 // pred_check
      %p1061 = pneg %p1060
    $region46: #{vanet_forward.1} parent=5 // pred_check_branch
      %1063 = sbr.rel (%p1061) target = $region48
    $region47: #{vanet_forward.1} parent=5 // pred_region
      %s1064 = ssub.s32 %s11, 2
      // Predicated region
      $region49: #{vanet_forward.1} parent=47 // pred_check
        %p1065 = pneg %p150
      $region50: #{vanet_forward.1} parent=47 // pred_check_branch
        %1067 = sbr.rel (%p1065) target = $region52
      $region51: #{vanet_forward.1} parent=47 // pred_region
        %s1068 = smul.u32 8, %s17
        %p1069 = scmp.lt.s32.totalorder %s1068, 15
        %s1070 = scalar_select %p1069, %s1068, 15
        %s1071 = smul.addr %s1070, 8
        %s1072 = scalar_lea.vmem %s5, %s1071
      $region52: #{vanet_forward.1} parent=47 // pred_fallthru
        _
    $region48: #{vanet_forward.1} parent=5 // pred_fallthru
      _
  $region6: #{vanet_forward.1} parent=0 // loop_footer
    %s15 = sadd.s32 1, %s11
  $region7: #{vanet_forward.1} parent=0 // loop_footer_branch
    %10 = sbr.rel target = $region3
  $region8: #{vanet_forward.1} parent=0 // loop_exit
    _

</llo_original>
